<compile_context>
chip_gen: v7x
topology: tpu7x:2x2x1
jax: 0.10.0
libtpu: 0.0.40
codegen_flags: <defaults>
</compile_context>

<pallas_src>
import functools

import numpy as np
import jax
import jax.numpy as jnp
from jax.experimental import pallas as pl
from jax.experimental.pallas import tpu as pltpu


# ------------------------- STFT configuration (deterministic) ----------------
# No 'window' entry: torch.stft(window=None) uses a rectangular window.
STFT_DICT = dict(
    n_fft=32,
    hop_length=8,
    win_length=32,
    center=True,
    pad_mode="reflect",
    normalized=False,
    onesided=True,
    return_complex=False,
)

LANES = 128        # TPU lane width; output last dim padded to 128 for unmasked stores.
MAX_TM = 512       # frame-row tile (sweeps near the HBM roofline; fits v7x VMEM easily)


def _round_up(x, m):
    return -(-x // m) * m


# ---------------------- windowed DFT basis (cached constant) -----------------
@functools.lru_cache(maxsize=None)
def _dft_basis_np(n_fft, win_length, window_kind):
    """(n_fft, 128) f32: columns interleaved (cos_k, -sin_k) per frequency k,
    zero-padded to 128 lanes.  Built once per config (hoisted off the hot path)."""
    if window_kind == "hann":
        w = 0.5 * (1.0 - np.cos(2.0 * np.pi * np.arange(win_length) / win_length))
    else:  # rectangular, matches torch.stft(window=None)
        w = np.ones(win_length, np.float64)
    # torch centers a shorter window inside n_fft with zero padding.
    wfull = np.zeros(n_fft, np.float64)
    lpad = (n_fft - win_length) // 2
    wfull[lpad:lpad + win_length] = w

    F = n_fft // 2 + 1
    n_idx = np.arange(n_fft)
    k_idx = np.arange(F)
    ang = 2.0 * np.pi * np.outer(n_idx, k_idx) / n_fft          # (n_fft, F)
    basis = np.zeros((n_fft, LANES), np.float32)
    basis[:, 0:2 * F:2] = (wfull[:, None] * np.cos(ang)).astype(np.float32)
    basis[:, 1:2 * F:2] = (-wfull[:, None] * np.sin(ang)).astype(np.float32)
    return basis


# ------------------------------ Pallas kernel --------------------------------
def _stft_matmul_kernel(frames_ref, basis_ref, out_ref):
    """One (TM, n_fft) @ (n_fft, 128) MXU matmul per grid step.

    frames_ref : (TM, n_fft)  framed, windowable signal rows (f32)
    basis_ref  : (n_fft, 128) re/im-interleaved windowed DFT basis (resident)
    out_ref    : (TM, 128)    lane-dense output block (full-width stores)
    """
    out_ref[...] = jnp.dot(
        frames_ref[...], basis_ref[...], preferred_element_type=jnp.float32
    )


def _stft_pallas(frames, basis, tm):
    """frames: (M_pad, n_fft) f32, basis: (n_fft, 128) f32 -> (M_pad, 128) f32."""
    M_pad, n_fft = frames.shape
    _, lanes = basis.shape
    grid = (pl.cdiv(M_pad, tm),)
    return pl.pallas_call(
        _stft_matmul_kernel,
        out_shape=jax.ShapeDtypeStruct((M_pad, lanes), jnp.float32),
        grid_spec=pltpu.PrefetchScalarGridSpec(
            num_scalar_prefetch=0,
            grid=grid,
            in_specs=[
                pl.BlockSpec((tm, n_fft), lambda i: (i, 0)),      # M-tiled LHS
                pl.BlockSpec((n_fft, lanes), lambda i: (0, 0)),   # resident basis
            ],
            out_specs=pl.BlockSpec((tm, lanes), lambda i: (i, 0)),
        ),
        compiler_params=pltpu.CompilerParams(
            # M tiles are independent -> pipeline + megacore sharding on v7x.
            dimension_semantics=("parallel",),
        ),
    )(frames, basis)


# --------------------------- jitted per-config wrapper ------------------------
@functools.lru_cache(maxsize=None)
def _make_stft_fn(B, L, n_fft, hop, win_length, center, pad_mode, window_kind):
    assert win_length <= n_fft
    assert n_fft % hop == 0  # required by the hop-row framing below
    pad = n_fft // 2 if center else 0
    Lp = L + 2 * pad
    assert Lp >= n_fft
    n_frames = 1 + (Lp - n_fft) // hop
    F = n_fft // 2 + 1
    assert 2 * F <= LANES
    n_shifts = n_fft // hop

    M = B * n_frames
    TM = min(MAX_TM, _round_up(M, 8))
    M_pad = _round_up(M, TM)

    basis = jnp.asarray(_dft_basis_np(n_fft, win_length, window_kind))

    def fn(x):
        x = x.astype(jnp.float32)
        xp = jnp.pad(x, ((0, 0), (pad, pad)), mode=pad_mode) if center else x

        # Framing via hop-sample rows + static shifted slices (no gather):
        # frame t = rows t .. t + n_shifts - 1 of the hop-row view.
        t_rows = n_frames + n_shifts - 1
        rows = xp[:, : t_rows * hop].reshape(B, t_rows, hop)
        frames = jnp.concatenate(
            [rows[:, j:j + n_frames, :] for j in range(n_shifts)], axis=-1
        )                                                   # (B, n_frames, n_fft)
        frames = frames.reshape(M, n_fft)
        if M_pad > M:
            frames = jnp.pad(frames, ((0, M_pad - M), (0, 0)))  # zero rows -> zero out

        out = _stft_pallas(frames, basis, TM)               # (M_pad, 128)

        out = out[:M].reshape(B, n_frames, LANES)[:, :, : 2 * F]
        res = out.reshape(B, n_frames, F, 2)                # (B, T, F, 2)
        # torch.stft layout (return_complex=False): (B, F, T, 2).
        # TODO(synk): this transpose stays in XLA; fusing it into the consumer
        # (or emitting F-major from a per-batch grid) only pays off at large B.
        return jnp.transpose(res, (0, 2, 1, 3))

    return jax.jit(fn)


def stft_forward(x, stft_dict=STFT_DICT, window=None):
    """Reproduces torch.stft(x, **stft_dict) for 1-D (T,) or 2-D (B, T) input.

    window=None -> rectangular (torch default when stft_dict has no window);
    window="hann" -> periodic Hann of length win_length."""
    assert stft_dict["onesided"] and not stft_dict["normalized"]
    assert not stft_dict.get("return_complex", False)
    window_kind = "hann" if window == "hann" else "rect"

    squeeze = x.ndim == 1
    if squeeze:
        x = x[None, :]
    B, L = x.shape
    fn = _make_stft_fn(
        B, L,
        int(stft_dict["n_fft"]), int(stft_dict["hop_length"]),
        int(stft_dict["win_length"]), bool(stft_dict["center"]),
        str(stft_dict["pad_mode"]), window_kind,
    )
    out = fn(x)
    return out[0] if squeeze else out


# ---------------------------------- main --------------------------------------
if __name__ == "__main__":
    key = jax.random.PRNGKey(0)
    B, T_signal = 2, 256
    x = jax.random.normal(key, (B, T_signal), dtype=jnp.float32)

    out = stft_forward(x)                      # rectangular window (torch default)
    out = jax.block_until_ready(out)

    # Pure-numpy reference of the same math (rectangular window).
    n_fft, hop = STFT_DICT["n_fft"], STFT_DICT["hop_length"]
    pad = n_fft // 2
    xp = np.asarray(jnp.pad(x, ((0, 0), (pad, pad)), mode="reflect"))
    n_frames = 1 + (xp.shape[1] - n_fft) // hop
    F = n_fft // 2 + 1
    n = np.arange(n_fft)
    k = np.arange(F)
    ang = 2.0 * np.pi * np.outer(n, k) / n_fft
    idx = (np.arange(n_frames) * hop)[:, None] + n[None, :]
    fr = xp[:, idx]                                              # (B, T, n_fft)
    ref_real = np.einsum("btn,nk->bkt", fr, np.cos(ang))
    ref_imag = np.einsum("btn,nk->bkt", fr, -np.sin(ang))
    ref = np.stack([ref_real, ref_imag], axis=-1).astype(np.float32)

    assert out.shape == (B, F, n_frames, 2), out.shape
    np.testing.assert_allclose(np.asarray(out), ref, rtol=1e-3, atol=1e-3)

    print("KERNEL_OK")
</pallas_src>

<mosaic_0001>
module attributes {stable_mosaic.version = 11 : i64} {
  func.func @_stft_matmul_kernel(%arg0: i32, %arg1: memref<72x32xf32, #tpu.memory_space<vmem>>, %arg2: memref<32x128xf32, #tpu.memory_space<vmem>>, %arg3: memref<72x128xf32, #tpu.memory_space<vmem>>) attributes {dimension_semantics = [#tpu.dimension_semantics<parallel>], iteration_bounds = array<i64: 1>, scalar_prefetch = 0 : i64, scratch_operands = 0 : i64, tpu.core_type = #tpu.core_type<tc>, window_params = [{transform_indices = @transform_0, window_bounds = array<i64: 72, 32>}, {pipeline_mode = #tpu.pipeline_mode<synchronous>, transform_indices = @transform_1, window_bounds = array<i64: 32, 128>}, {transform_indices = @transform_2, window_bounds = array<i64: 72, 128>}]} {
    %c0 = arith.constant 0 : index
    %c0_0 = arith.constant 0 : index
    %0 = vector.load %arg1[%c0, %c0_0] : memref<72x32xf32, #tpu.memory_space<vmem>>, vector<72x32xf32>
    %c0_1 = arith.constant 0 : index
    %c0_2 = arith.constant 0 : index
    %1 = vector.load %arg2[%c0_1, %c0_2] : memref<32x128xf32, #tpu.memory_space<vmem>>, vector<32x128xf32>
    %cst = arith.constant dense<0.000000e+00> : vector<72x128xf32>
    %2 = tpu.matmul %0, %1, %cst {dimension_numbers = #tpu.dot_dimension_numbers<[1], [0], [0], [1], [0, 0, 1, 1], [], []>} : vector<72x32xf32>, vector<32x128xf32>, vector<72x128xf32> -> vector<72x128xf32>
    %c0_3 = arith.constant 0 : index
    %c0_4 = arith.constant 0 : index
    %3 = vector.load %arg3[%c0_3, %c0_4] : memref<72x128xf32, #tpu.memory_space<vmem>>, vector<72x128xf32>
    tpu.vector_store %arg3[%c0_3, %c0_4], %2 {strides = array<i32>} : memref<72x128xf32, #tpu.memory_space<vmem>>, vector<72x128xf32>,
    return
  }
  func.func @transform_0(%arg0: i32) -> (i32, i32) {
    %c0_i32 = arith.constant 0 : i32
    %c0_i32_0 = arith.constant 0 : i32
    return %arg0, %c0_i32 : i32, i32
  }
  func.func @transform_1(%arg0: i32) -> (i32, i32) {
    %c0_i32 = arith.constant 0 : i32
    %c0_i32_0 = arith.constant 0 : i32
    %c0_i32_1 = arith.constant 0 : i32
    return %c0_i32, %c0_i32_0 : i32, i32
  }
  func.func @transform_2(%arg0: i32) -> (i32, i32) {
    %c0_i32 = arith.constant 0 : i32
    %c0_i32_0 = arith.constant 0 : i32
    return %arg0, %c0_i32 : i32, i32
  }
}

</mosaic_0001>

<llo_original>
// kernel: fn.1
$region0: #{fn.1}
  #allocation0 [shape = 'u32[]', space=smem, size = 0x4, offset = 0x4, fixed_abs, tag = 'smem constant byte address 0x4 - core index']
  #allocation1 [shape = 'u32[144,128]{1,0:T(1,128)}', space=vmem, size = 0x12000, scoped, tag = 'internal scratch']
  %s0 = inlined_call_operand.vmem [shape: f32[72,32], index: 0, kind: input, shape index: {}]
  %s1 = inlined_call_operand.vmem [shape: f32[32,128], index: 1, kind: input, shape index: {}]
  %s2 = inlined_call_operand.vmem [shape: f32[72,128], index: 2, kind: output, shape index: {}]
  %s3 = sld [smem:[#allocation0]]
  $region18: #{fn.1} parent=0
    _
  %s5 = ssub.s32 1, %s3
  %s6 = scalar_select 0, %s5, %s3
  // Predicated region
  $region2: #{fn.1} parent=0 // pred_check
    _
  $region3: #{fn.1} parent=0 // pred_check_branch
    %8 = sbr.rel (0) target = $region5
  $region4: #{fn.1} parent=0 // pred_region
    _
  $region5: #{fn.1} parent=0 // pred_fallthru
    _
  // Predicated region
  $region6: #{fn.1} parent=0 // pred_check
    _
  $region7: #{fn.1} parent=0 // pred_check_branch
    %10 = sbr.rel (0) target = $region9
  $region8: #{fn.1} parent=0 // pred_region
    _
  $region9: #{fn.1} parent=0 // pred_fallthru
    _
  %v11 = vld [vmem:[%s0] sm:$0xff]
  %v12 = vld [vmem:[%s0 + $0x8] sm:$0xff]
  %v13 = vld [vmem:[%s0 + $0x10] sm:$0xff]
  %v14 = vld [vmem:[%s0 + $0x18] sm:$0xff]
  %v15 = vld [vmem:[%s0 + $0x20] sm:$0xff]
  %v16 = vld [vmem:[%s0 + $0x28] sm:$0xff]
  %v17 = vld [vmem:[%s0 + $0x30] sm:$0xff]
  %v18 = vld [vmem:[%s0 + $0x38] sm:$0xff]
  %v19 = vld [vmem:[%s0 + $0x40] sm:$0xff]
  %v20 = vld [vmem:[%s1] sm:$0xff]
  %v21 = vld [vmem:[%s1 + $0x8] sm:$0xff]
  %v22 = vld [vmem:[%s1 + $0x10] sm:$0xff]
  %v23 = vld [vmem:[%s1 + $0x18] sm:$0xff]
  %vm24 = vcmask 261120
  %v26 = vsel %vm24, %v11, 0
  %v29 = vsel %vm24, %v12, 0
  %v32 = vsel %vm24, %v13, 0
  %v35 = vsel %vm24, %v14, 0
  %v38 = vsel %vm24, %v15, 0
  %v41 = vsel %vm24, %v16, 0
  %v44 = vsel %vm24, %v17, 0
  %v47 = vsel %vm24, %v18, 0
  %v50 = vsel %vm24, %v19, 0
  %52 = vmatprep.subr.mxu0 0.0
  %53 = vmatpush1.msra.mxu0 %v20
  %54 = vmatprep.subr.mxu0 0.0
  %55 = vmatpush1.msra.mxu0 %v21
  %56 = vmatprep.subr.mxu0 0.0
  %57 = vmatpush1.msra.mxu0 %v22
  %58 = vmatprep.subr.mxu0 0.0
  %59 = vmatpush1.msra.mxu0 %v23
  %60 = vmatprep.subr.mxu0 0.0
  %61 = vmatpush1.msra.mxu0 0.0
  %62 = vmatprep.subr.mxu0 0.0
  %63 = vmatpush1.msra.mxu0 0.0
  %64 = vmatprep.subr.mxu0 0.0
  %65 = vmatpush1.msra.mxu0 0.0
  %66 = vmatprep.subr.mxu0 0.0
  %67 = vmatpush1.msra.mxu0 0.0
  %68 = vmatprep.subr.mxu0 0.0
  %69 = vmatpush1.msra.mxu0 0.0
  %70 = vmatprep.subr.mxu0 0.0
  %71 = vmatpush1.msra.mxu0 0.0
  %72 = vmatprep.subr.mxu0 0.0
  %73 = vmatpush1.msra.mxu0 0.0
  %74 = vmatprep.subr.mxu0 0.0
  %75 = vmatpush1.msra.mxu0 0.0
  %76 = vmatprep.subr.mxu0 0.0
  %77 = vmatpush1.msra.mxu0 0.0
  %78 = vmatprep.subr.mxu0 0.0
  %79 = vmatpush1.msra.mxu0 0.0
  %80 = vmatprep.subr.mxu0 0.0
  %81 = vmatpush1.msra.mxu0 0.0
  %82 = vmatprep.subr.mxu0 0.0
  %83 = vmatpush1.msra.mxu0 0.0
  %84 = vmatprep.subr.mxu0 0.0
  %85 = vmatpush1.msra.mxu0 0.0
  %86 = vmatprep.subr.mxu0 0.0
  %87 = vmatpush1.msra.mxu0 0.0
  %88 = vmatprep.subr.mxu0 0.0
  %89 = vmatpush1.msra.mxu0 0.0
  %90 = vmatprep.subr.mxu0 0.0
  %91 = vmatpush1.msra.mxu0 0.0
  %92 = vmatprep.subr.mxu0 0.0
  %93 = vmatpush1.msra.mxu0 0.0
  %94 = vmatprep.subr.mxu0 0.0
  %95 = vmatpush1.msra.mxu0 0.0
  %96 = vmatprep.subr.mxu0 0.0
  %97 = vmatpush1.msra.mxu0 0.0
  %98 = vmatprep.subr.mxu0 0.0
  %99 = vmatpush1.msra.mxu0 0.0
  %100 = vmatprep.subr.mxu0 0.0
  %101 = vmatpush1.msra.mxu0 0.0
  %102 = vmatprep.subr.mxu0 0.0
  %103 = vmatpush1.msra.mxu0 0.0
  %104 = vmatprep.subr.mxu0 0.0
  %105 = vmatpush1.msra.mxu0 0.0
  %106 = vmatprep.subr.mxu0 0.0
  %107 = vmatpush1.msra.mxu0 0.0
  %108 = vmatprep.subr.mxu0 0.0
  %109 = vmatpush1.msra.mxu0 0.0
  %110 = vmatprep.subr.mxu0 0.0
  %111 = vmatpush1.msra.mxu0 0.0
  %112 = vmatprep.subr.mxu0 0.0
  %113 = vmatpush1.msra.mxu0 0.0
  %114 = vmatprep.subr.mxu0 0.0
  %115 = vmatpush1.msra.mxu0 0.0
  %116 = vmatprep.mubr.f32.mxu0 0.0
  %117 = vmatmul.mubr.f32.gmra.mrb[0].mxu0 %v26
  %v118 = vpop.f32.mrb[0].mxu0
  %v119 = vadd.f32 0.0, %v118
  %v120 = vpop.f32.mrb[0].mxu0
  %121 = vmatprep.mubr.f32.mxu0 0.0
  %122 = vmatmul.mubr.f32.gmra.mrb[0].mxu0 %v29
  %v123 = vpop.f32.mrb[0].mxu0
  %v124 = vadd.f32 0.0, %v123
  %v125 = vpop.f32.mrb[0].mxu0
  %126 = vmatprep.mubr.f32.mxu0 0.0
  %127 = vmatmul.mubr.f32.gmra.mrb[0].mxu0 %v32
  %v128 = vpop.f32.mrb[0].mxu0
  %v129 = vadd.f32 0.0, %v128
  %v130 = vpop.f32.mrb[0].mxu0
  %131 = vmatprep.mubr.f32.mxu0 0.0
  %132 = vmatmul.mubr.f32.gmra.mrb[0].mxu0 %v35
  %v133 = vpop.f32.mrb[0].mxu0
  %v134 = vadd.f32 0.0, %v133
  %v135 = vpop.f32.mrb[0].mxu0
  %136 = vmatprep.mubr.f32.mxu0 0.0
  %137 = vmatmul.mubr.f32.gmra.mrb[0].mxu0 %v38
  %v138 = vpop.f32.mrb[0].mxu0
  %v139 = vadd.f32 0.0, %v138
  %v140 = vpop.f32.mrb[0].mxu0
  %141 = vmatprep.mubr.f32.mxu0 0.0
  %142 = vmatmul.mubr.f32.gmra.mrb[0].mxu0 %v41
  %v143 = vpop.f32.mrb[0].mxu0
  %v144 = vadd.f32 0.0, %v143
  %v145 = vpop.f32.mrb[0].mxu0
  %146 = vmatprep.mubr.f32.mxu0 0.0
  %147 = vmatmul.mubr.f32.gmra.mrb[0].mxu0 %v44
  %v148 = vpop.f32.mrb[0].mxu0
  %v149 = vadd.f32 0.0, %v148
  %v150 = vpop.f32.mrb[0].mxu0
  %151 = vmatprep.mubr.f32.mxu0 0.0
  %152 = vmatmul.mubr.f32.gmra.mrb[0].mxu0 %v47
  %v153 = vpop.f32.mrb[0].mxu0
  %v154 = vadd.f32 0.0, %v153
  %v155 = vpop.f32.mrb[0].mxu0
  %156 = vmatprep.mubr.f32.mxu0 0.0
  %157 = vmatmul.mubr.f32.gmra.mrb[0].mxu0 %v50
  %v158 = vpop.f32.mrb[0].mxu0
  %v159 = vadd.f32 0.0, %v158
  %v160 = vpop.f32.mrb[0].mxu0
  %161 = vdwg.mxu0
  %162 = vst [vmem:[%s2] sm:$0xff] %v119
  %163 = vst [vmem:[%s2 + $0x8] sm:$0xff] %v124
  %164 = vst [vmem:[%s2 + $0x10] sm:$0xff] %v129
  %165 = vst [vmem:[%s2 + $0x18] sm:$0xff] %v134
  %166 = vst [vmem:[%s2 + $0x20] sm:$0xff] %v139
  %167 = vst [vmem:[%s2 + $0x28] sm:$0xff] %v144
  %168 = vst [vmem:[%s2 + $0x30] sm:$0xff] %v149
  %169 = vst [vmem:[%s2 + $0x38] sm:$0xff] %v154
  %170 = vst [vmem:[%s2 + $0x40] sm:$0xff] %v159
  // Predicated region
  $region10: #{fn.1} parent=0 // pred_check
    _
  $region11: #{fn.1} parent=0 // pred_check_branch
    %172 = sbr.rel (0) target = $region13
  $region12: #{fn.1} parent=0 // pred_region
    _
  $region13: #{fn.1} parent=0 // pred_fallthru
    _
  // Predicated region
  $region14: #{fn.1} parent=0 // pred_check
    _
  $region15: #{fn.1} parent=0 // pred_check_branch
    %174 = sbr.rel (0) target = $region17
  $region16: #{fn.1} parent=0 // pred_region
    _
  $region17: #{fn.1} parent=0 // pred_fallthru
    _

</llo_original>
